<compile_context>
chip_gen: v5e
topology: v5e:2x2
jax: 0.10.0
libtpu: 0.0.40
codegen_flags: <defaults>
</compile_context>

<pallas_src>
import math

import jax
import jax.numpy as jnp
from jax.experimental import pallas as pl
from jax.experimental.pallas import tpu as pltpu


def _model_tanh_kernel(x_ref, cwk_ref, cb_ref, dw_ref, db_ref, o_ref):
    # x_ref   : (1, R, CH)   R = NB*W rows (folded batch x width), CH = C*H lanes
    # cwk_ref : (CH, CH)     kron(conv_weight, I_H).T  (right-multiply form)
    # cb_ref  : (1, CH)      conv bias, repeated per spatial row h
    # dw_ref  : (R, R)       kron(I_NB, dense_weight)  (left-multiply form)
    # db_ref  : (R, 1)       dense bias, tiled per folded batch element
    x = x_ref[0].astype(jnp.float32)          # (R, CH)
    cwk = cwk_ref[...].astype(jnp.float32)    # (CH, CH)
    cb = cb_ref[...].astype(jnp.float32)      # (1, CH)
    dw = dw_ref[...].astype(jnp.float32)      # (R, R)
    db = db_ref[...].astype(jnp.float32)      # (R, 1)

    def conv1x1(v):
        # channel mixing over the lane axis (MXU)
        return jnp.dot(v, cwk, preferred_element_type=jnp.float32) + cb

    def dense(v):
        # Linear over the W (sublane) axis (MXU), block-diagonal across folded batch
        return jnp.dot(dw, v, preferred_element_type=jnp.float32) + db

    def swish(v):
        # v * sigmoid(v): exp on EUP, approximate reciprocal on EUP (VALU stays free)
        return v * pl.reciprocal(1.0 + jnp.exp(-v), approx=True)

    h = conv1x1(x)
    h = 2.0 * swish(h) - 1.0          # 2*x*sigmoid(x) - 1
    h = dense(h)
    h = jnp.tanh(h)
    # drop1 / dropout / drop2: identity at inference (eval mode, no scaling)
    h = dense(h)
    h = 2.0 * swish(h) - 1.0          # x/(1+exp(-x)) then 2*x - 1
    h = conv1x1(h)
    h = jnp.tanh(h)

    o_ref[0] = h.astype(o_ref.dtype)


def model_tanh_forward(x_nchw, conv_w, conv_b, dense_w, dense_b, *, grid_blocks=None):
    """x_nchw: (N, C, H, W) float32.  conv_w: (C, C) 1x1 conv weight (out, in).
    dense_w: (W, W) Linear weight (out, in)."""
    N, C, H, W = x_nchw.shape
    CH = C * H

    # Grid: 2 parallel blocks (one per v7x TensorCore) when the batch is even,
    # else a single block.  Remaining batch folds into the sublane axis.
    if grid_blocks is None:
        grid_blocks = 2 if (N >= 2 and N % 2 == 0) else 1
    G = grid_blocks
    assert N % G == 0, "batch must divide evenly across grid blocks"
    NB = N // G
    R = NB * W

    # --- wrapper-side layout plumbing (plain JAX) ---
    # (N, C, H, W) -> (N, C*H, W) -> lane-dense (N, W, C*H) -> fold to (G, NB*W, C*H)
    x_slab = jnp.transpose(x_nchw.reshape(N, CH, W), (0, 2, 1)).reshape(G, R, CH)

    # conv as right-multiply on the lane axis
    cwk_t = jnp.kron(conv_w, jnp.eye(H, dtype=conv_w.dtype)).T        # (CH, CH)
    cb_row = jnp.repeat(conv_b, H).reshape(1, CH)                     # (1, CH)
    # dense as left-multiply on the (folded) sublane axis
    dw_blk = jnp.kron(jnp.eye(NB, dtype=dense_w.dtype), dense_w)      # (R, R)
    db_col = jnp.tile(dense_b, NB).reshape(R, 1)                      # (R, 1)

    out_slab = pl.pallas_call(
        _model_tanh_kernel,
        out_shape=jax.ShapeDtypeStruct((G, R, CH), x_nchw.dtype),
        grid_spec=pltpu.PrefetchScalarGridSpec(
            num_scalar_prefetch=0,
            grid=(G,),
            in_specs=[
                pl.BlockSpec((1, R, CH), lambda g: (g, 0, 0)),
                pl.BlockSpec((CH, CH), lambda g: (0, 0)),
                pl.BlockSpec((1, CH), lambda g: (0, 0)),
                pl.BlockSpec((R, R), lambda g: (0, 0)),
                pl.BlockSpec((R, 1), lambda g: (0, 0)),
            ],
            out_specs=pl.BlockSpec((1, R, CH), lambda g: (g, 0, 0)),
        ),
        compiler_params=pltpu.CompilerParams(
            dimension_semantics=("parallel",),
        ),
    )(x_slab, cwk_t, cb_row, dw_blk, db_col)

    # un-fold and transpose back to NCHW
    out_t = out_slab.reshape(N, W, CH)
    return jnp.transpose(out_t, (0, 2, 1)).reshape(N, C, H, W)


def _reference_forward(x, conv_w, conv_b, dense_w, dense_b):
    """Plain-JAX reference of the PyTorch forward (eval mode)."""
    def conv(v):  # 1x1 conv over channel axis of NCHW
        return jnp.einsum("oi,nihw->nohw", conv_w, v) + conv_b[None, :, None, None]

    def dense(v):  # Linear over last axis
        return jnp.einsum("nchw,vw->nchv", v, dense_w) + dense_b

    h = conv(x)
    h = 2.0 * h / (1.0 + jnp.exp(-h)) - 1.0
    h = dense(h)
    h = jnp.tanh(h)
    h = dense(h)
    h = h / (1.0 + jnp.exp(-h))
    h = 2.0 * h - 1.0
    h = conv(h)
    return jnp.tanh(h)


if __name__ == "__main__":
    N, C, H, W = 2, 16, 10, 10

    key = jax.random.PRNGKey(0)
    kx, kcw, kdw = jax.random.split(key, 3)

    # Input (NCHW, like torch.randn(1, 16, 10, 10) but with batch=2).
    x = jax.random.normal(kx, (N, C, H, W), dtype=jnp.float32)

    # Conv2d(16, 16, 1): kaiming_uniform_(a=sqrt(5)) style bound, zero bias.
    fan_in_conv = C  # C_in * 1 * 1
    conv_bound = math.sqrt(2.0 / (1.0 + 5.0)) * math.sqrt(3.0 / fan_in_conv)
    conv_w = jax.random.uniform(
        kcw, (C, C), dtype=jnp.float32, minval=-conv_bound, maxval=conv_bound
    )
    conv_b = jnp.zeros((C,), dtype=jnp.float32)  # nn.init.zeros_

    # Linear(10, 10): kaiming-uniform-style weight, zero bias.
    dense_bound = 1.0 / math.sqrt(W)
    dense_w = jax.random.uniform(
        kdw, (W, W), dtype=jnp.float32, minval=-dense_bound, maxval=dense_bound
    )
    dense_b = jnp.zeros((W,), dtype=jnp.float32)

    out = model_tanh_forward(x, conv_w, conv_b, dense_w, dense_b)
    out = jax.block_until_ready(out)

    ref = _reference_forward(x, conv_w, conv_b, dense_w, dense_b)
    assert out.shape == (N, C, H, W)
    # Tolerance loosened slightly vs. 1e-5 because the kernel routes the sigmoid
    # denominator through the EUP approximate reciprocal (per perf review); the
    # output is tanh-bounded so 5e-3 still catches any layout/indexing error.
    assert jnp.allclose(out, ref, atol=5e-3, rtol=5e-3), "mismatch vs reference"

    print("KERNEL_OK")
</pallas_src>

<mosaic_0001>
module attributes {stable_mosaic.version = 11 : i64} {
  func.func @_model_tanh_kernel(%arg0: i32, %arg1: memref<1x10x160xf32, #tpu.memory_space<vmem>>, %arg2: memref<160x160xf32, #tpu.memory_space<vmem>>, %arg3: memref<1x160xf32, #tpu.memory_space<vmem>>, %arg4: memref<10x10xf32, #tpu.memory_space<vmem>>, %arg5: memref<10x1xf32, #tpu.memory_space<vmem>>, %arg6: memref<1x10x160xf32, #tpu.memory_space<vmem>>) attributes {dimension_semantics = [#tpu.dimension_semantics<parallel>], iteration_bounds = array<i64: 2>, scalar_prefetch = 0 : i64, scratch_operands = 0 : i64, tpu.core_type = #tpu.core_type<tc>, window_params = [{transform_indices = @transform_0, window_bounds = array<i64: 1, 10, 160>}, {pipeline_mode = #tpu.pipeline_mode<synchronous>, transform_indices = @transform_1, window_bounds = array<i64: 160, 160>}, {pipeline_mode = #tpu.pipeline_mode<synchronous>, transform_indices = @transform_2, window_bounds = array<i64: 1, 160>}, {pipeline_mode = #tpu.pipeline_mode<synchronous>, transform_indices = @transform_3, window_bounds = array<i64: 10, 10>}, {pipeline_mode = #tpu.pipeline_mode<synchronous>, transform_indices = @transform_4, window_bounds = array<i64: 10, 1>}, {transform_indices = @transform_5, window_bounds = array<i64: 1, 10, 160>}]} {
    %c0 = arith.constant 0 : index
    %c0_0 = arith.constant 0 : index
    %c0_1 = arith.constant 0 : index
    %0 = vector.load %arg1[%c0, %c0_0, %c0_1] : memref<1x10x160xf32, #tpu.memory_space<vmem>>, vector<1x10x160xf32>
    %1 = vector.shape_cast %0 : vector<1x10x160xf32> to vector<10x160xf32>
    %c0_2 = arith.constant 0 : index
    %c0_3 = arith.constant 0 : index
    %2 = vector.load %arg2[%c0_2, %c0_3] : memref<160x160xf32, #tpu.memory_space<vmem>>, vector<160x160xf32>
    %c0_4 = arith.constant 0 : index
    %c0_5 = arith.constant 0 : index
    %3 = vector.load %arg3[%c0_4, %c0_5] : memref<1x160xf32, #tpu.memory_space<vmem>>, vector<1x160xf32>
    %c0_6 = arith.constant 0 : index
    %c0_7 = arith.constant 0 : index
    %4 = vector.load %arg4[%c0_6, %c0_7] : memref<10x10xf32, #tpu.memory_space<vmem>>, vector<10x10xf32>
    %c0_8 = arith.constant 0 : index
    %c0_9 = arith.constant 0 : index
    %5 = vector.load %arg5[%c0_8, %c0_9] : memref<10x1xf32, #tpu.memory_space<vmem>>, vector<10x1xf32>
    %cst = arith.constant dense<0.000000e+00> : vector<10x160xf32>
    %6 = tpu.matmul %1, %2, %cst {dimension_numbers = #tpu.dot_dimension_numbers<[1], [0], [0], [1], [0, 0, 1, 1], [], []>} : vector<10x160xf32>, vector<160x160xf32>, vector<10x160xf32> -> vector<10x160xf32>
    %7 = vector.broadcast %3 : vector<1x160xf32> to vector<10x160xf32>
    %8 = arith.addf %6, %7 : vector<10x160xf32>
    %cst_10 = arith.constant 0.000000e+00 : f32
    %9 = vector.broadcast %cst_10 : f32 to vector<10x160xf32>
    %10 = arith.subf %9, %8 : vector<10x160xf32>
    %11 = math.exp %10 : vector<10x160xf32>
    %cst_11 = arith.constant 1.000000e+00 : f32
    %12 = vector.broadcast %cst_11 : f32 to vector<10x160xf32>
    %13 = arith.addf %12, %11 : vector<10x160xf32>
    %14 = tpu.reciprocal %13 {approx = true} : vector<10x160xf32> -> vector<10x160xf32>
    %15 = arith.mulf %8, %14 : vector<10x160xf32>
    %cst_12 = arith.constant 2.000000e+00 : f32
    %16 = vector.broadcast %cst_12 : f32 to vector<10x160xf32>
    %17 = arith.mulf %16, %15 : vector<10x160xf32>
    %cst_13 = arith.constant 1.000000e+00 : f32
    %18 = vector.broadcast %cst_13 : f32 to vector<10x160xf32>
    %19 = arith.subf %17, %18 : vector<10x160xf32>
    %cst_14 = arith.constant dense<0.000000e+00> : vector<10x160xf32>
    %20 = tpu.matmul %4, %19, %cst_14 {dimension_numbers = #tpu.dot_dimension_numbers<[1], [0], [0], [1], [0, 0, 1, 1], [], []>} : vector<10x10xf32>, vector<10x160xf32>, vector<10x160xf32> -> vector<10x160xf32>
    %21 = vector.broadcast %5 : vector<10x1xf32> to vector<10x160xf32>
    %22 = arith.addf %20, %21 : vector<10x160xf32>
    %23 = math.tanh %22 : vector<10x160xf32>
    %cst_15 = arith.constant dense<0.000000e+00> : vector<10x160xf32>
    %24 = tpu.matmul %4, %23, %cst_15 {dimension_numbers = #tpu.dot_dimension_numbers<[1], [0], [0], [1], [0, 0, 1, 1], [], []>} : vector<10x10xf32>, vector<10x160xf32>, vector<10x160xf32> -> vector<10x160xf32>
    %25 = vector.broadcast %5 : vector<10x1xf32> to vector<10x160xf32>
    %26 = arith.addf %24, %25 : vector<10x160xf32>
    %cst_16 = arith.constant 0.000000e+00 : f32
    %27 = vector.broadcast %cst_16 : f32 to vector<10x160xf32>
    %28 = arith.subf %27, %26 : vector<10x160xf32>
    %29 = math.exp %28 : vector<10x160xf32>
    %cst_17 = arith.constant 1.000000e+00 : f32
    %30 = vector.broadcast %cst_17 : f32 to vector<10x160xf32>
    %31 = arith.addf %30, %29 : vector<10x160xf32>
    %32 = tpu.reciprocal %31 {approx = true} : vector<10x160xf32> -> vector<10x160xf32>
    %33 = arith.mulf %26, %32 : vector<10x160xf32>
    %cst_18 = arith.constant 2.000000e+00 : f32
    %34 = vector.broadcast %cst_18 : f32 to vector<10x160xf32>
    %35 = arith.mulf %34, %33 : vector<10x160xf32>
    %cst_19 = arith.constant 1.000000e+00 : f32
    %36 = vector.broadcast %cst_19 : f32 to vector<10x160xf32>
    %37 = arith.subf %35, %36 : vector<10x160xf32>
    %cst_20 = arith.constant dense<0.000000e+00> : vector<10x160xf32>
    %38 = tpu.matmul %37, %2, %cst_20 {dimension_numbers = #tpu.dot_dimension_numbers<[1], [0], [0], [1], [0, 0, 1, 1], [], []>} : vector<10x160xf32>, vector<160x160xf32>, vector<10x160xf32> -> vector<10x160xf32>
    %39 = vector.broadcast %3 : vector<1x160xf32> to vector<10x160xf32>
    %40 = arith.addf %38, %39 : vector<10x160xf32>
    %41 = math.tanh %40 : vector<10x160xf32>
    %c0_21 = arith.constant 0 : index
    %c0_22 = arith.constant 0 : index
    %c0_23 = arith.constant 0 : index
    %42 = vector.load %arg6[%c0_21, %c0_22, %c0_23] : memref<1x10x160xf32, #tpu.memory_space<vmem>>, vector<1x10x160xf32>
    %43 = vector.shape_cast %42 : vector<1x10x160xf32> to vector<10x160xf32>
    %44 = vector.shape_cast %41 : vector<10x160xf32> to vector<1x10x160xf32>
    tpu.vector_store %arg6[%c0_21, %c0_22, %c0_23], %44 {strides = array<i32>} : memref<1x10x160xf32, #tpu.memory_space<vmem>>, vector<1x10x160xf32>,
    return
  }
  func.func @transform_0(%arg0: i32) -> (i32, i32, i32) {
    %c0_i32 = arith.constant 0 : i32
    %c0_i32_0 = arith.constant 0 : i32
    %c0_i32_1 = arith.constant 0 : i32
    return %arg0, %c0_i32, %c0_i32_0 : i32, i32, i32
  }
  func.func @transform_1(%arg0: i32) -> (i32, i32) {
    %c0_i32 = arith.constant 0 : i32
    %c0_i32_0 = arith.constant 0 : i32
    %c0_i32_1 = arith.constant 0 : i32
    return %c0_i32, %c0_i32_0 : i32, i32
  }
  func.func @transform_2(%arg0: i32) -> (i32, i32) {
    %c0_i32 = arith.constant 0 : i32
    %c0_i32_0 = arith.constant 0 : i32
    %c0_i32_1 = arith.constant 0 : i32
    return %c0_i32, %c0_i32_0 : i32, i32
  }
  func.func @transform_3(%arg0: i32) -> (i32, i32) {
    %c0_i32 = arith.constant 0 : i32
    %c0_i32_0 = arith.constant 0 : i32
    %c0_i32_1 = arith.constant 0 : i32
    return %c0_i32, %c0_i32_0 : i32, i32
  }
  func.func @transform_4(%arg0: i32) -> (i32, i32) {
    %c0_i32 = arith.constant 0 : i32
    %c0_i32_0 = arith.constant 0 : i32
    %c0_i32_1 = arith.constant 0 : i32
    return %c0_i32, %c0_i32_0 : i32, i32
  }
  func.func @transform_5(%arg0: i32) -> (i32, i32, i32) {
    %c0_i32 = arith.constant 0 : i32
    %c0_i32_0 = arith.constant 0 : i32
    %c0_i32_1 = arith.constant 0 : i32
    return %arg0, %c0_i32, %c0_i32_0 : i32, i32, i32
  }
}

</mosaic_0001>

<llo_original>
// kernel: tpu_custom_call.1
$region0: #{tpu_custom_call.1}
  #allocation0 [shape = 'u32[]', space=smem, size = 0x4, offset = 0x4, fixed_abs, tag = 'smem constant byte address 0x4 - core index']
  #allocation1 [shape = 'u32[72,128]{1,0:T(1,128)}', space=vmem, size = 0x9000, scoped, tag = 'internal scratch']
  %s0 = inlined_call_operand.vmem [shape: f32[2,10,160], index: 0, kind: input, shape index: {}]
  %s1 = inlined_call_operand.hbm [shape: f32[160,160], index: 1, kind: input, shape index: {}]
  %s2 = inlined_call_operand.vmem [shape: f32[1,160], index: 2, kind: input, shape index: {}]
  %s3 = inlined_call_operand.vmem [shape: f32[10,10], index: 3, kind: input, shape index: {}]
  %s4 = inlined_call_operand.vmem [shape: f32[10,1], index: 4, kind: input, shape index: {}]
  %s5 = inlined_call_operand.vmem [shape: f32[2,10,160], index: 5, kind: output, shape index: {}]
  %s6 = sld [smem:[#allocation0]]
  $region57: #{tpu_custom_call.1} parent=0
    _
  %s8 = ssub.s32 1, %s6
  %s9 = scalar_select 0, %s8, %s6
  $region1: #{tpu_custom_call.1} parent=0
    #allocation2 [shape = 'u8[163840]{0}', space=vmem, size = 0x28000, scoped, tag = 'input window, operand 1, single buffered']
    #allocation3 [shape = 's32[2]{0}', space=sflag, size = 0x8, scoped, tag = 'scoped memory for tpu_custom_call.1']
    %10 = vsyncpa [#allocation3], 0
    loop: start=0, step=1, limit=4
    $region2: #{tpu_custom_call.1} parent=1 // loop_pre_header
      _
    $region3: #{tpu_custom_call.1} parent=1 // loop_header
      %s12 = sphi 0, %s16
      %p13 = scmp.ge.s32.totalorder %s12, 4
      %s22 = sphi 0, %s24
      %s25 = sphi 0, %s22
      %s26 = sphi 0, %s25
      %s42 = sphi 0, %s26
      %s46 = sphi 0, %s46
      %s48 = sphi 0, %s46
      %s49 = sphi 0, %s48
      %s63 = sphi 0, %s49
      %s67 = sphi 0, %s67
      %s69 = sphi 0, %s67
      %s70 = sphi 0, %s69
      %s84 = sphi 0, %s70
      %s88 = sphi 0, %s88
      %s90 = sphi 0, %s88
      %s91 = sphi 0, %s90
      %s105 = sphi 0, %s91
      %s109 = sphi 0, %s109
      %s111 = sphi 0, %s109
      %s112 = sphi 0, %s111
      %s126 = sphi 0, %s112
      %s132 = sphi 0, %s134
      %s135 = sphi 0, %s132
      %s136 = sphi 0, %s135
      %s152 = sphi 0, %s136
    $region4: #{tpu_custom_call.1} parent=1 // loop_header_branch
      %15 = sbr.rel (%p13) target = $region8
    $region5: #{tpu_custom_call.1} parent=1 // loop_body
      %s17 = ssub.s32 %s12, 1
      %s18 = ssub.s32 %s12, 2
      %s19 = sadd.s32 %s12, 1
      %s20 = ssub.s32 %s12, %s19
      %p21 = scmp.eq.s32.totalorder %s20, 0
      %s23 = sadd.s32 %s22, 1
      %s24 = scalar_select %p21, %s22, %s23
      %p27 = pneg %p21
      %p28 = scmp.eq.s32.totalorder %s12, 1
      %p29 = por %p27, %p28
      %p30 = scmp.ne.s32.totalorder %s22, %s25
      %p31 = scmp.eq.s32.totalorder %s12, 0
      %p32 = por %p30, %p31
      %p33 = scmp.ne.s32.totalorder %s22, %s25
      %p34 = scmp.eq.s32.totalorder %s17, 1
      %p35 = por %p33, %p34
      %p36 = scmp.ne.s32.totalorder %s25, %s26
      %p37 = scmp.eq.s32.totalorder %s17, 0
      %p38 = por %p36, %p37
      %p39 = scmp.ne.s32.totalorder %s25, %s26
      %p40 = scmp.eq.s32.totalorder %s18, 1
      %p41 = por %p39, %p40
      %p43 = scmp.ne.s32.totalorder %s26, %s42
      %p44 = scmp.eq.s32.totalorder %s18, 0
      %p45 = por %p43, %p44
      %s47 = sadd.s32 %s46, 1
      %p50 = scmp.eq.s32.totalorder %s12, 1
      %p51 = scmp.ne.s32.totalorder %s46, %s48
      %p52 = scmp.eq.s32.totalorder %s12, 0
      %p53 = por %p51, %p52
      %p54 = scmp.ne.s32.totalorder %s46, %s48
      %p55 = scmp.eq.s32.totalorder %s17, 1
      %p56 = por %p54, %p55
      %p57 = scmp.ne.s32.totalorder %s48, %s49
      %p58 = scmp.eq.s32.totalorder %s17, 0
      %p59 = por %p57, %p58
      %p60 = scmp.ne.s32.totalorder %s48, %s49
      %p61 = scmp.eq.s32.totalorder %s18, 1
      %p62 = por %p60, %p61
      %p64 = scmp.ne.s32.totalorder %s49, %s63
      %p65 = scmp.eq.s32.totalorder %s18, 0
      %p66 = por %p64, %p65
      %s68 = sadd.s32 %s67, 1
      %p71 = scmp.eq.s32.totalorder %s12, 1
      %p72 = scmp.ne.s32.totalorder %s67, %s69
      %p73 = scmp.eq.s32.totalorder %s12, 0
      %p74 = por %p72, %p73
      %p75 = scmp.ne.s32.totalorder %s67, %s69
      %p76 = scmp.eq.s32.totalorder %s17, 1
      %p77 = por %p75, %p76
      %p78 = scmp.ne.s32.totalorder %s69, %s70
      %p79 = scmp.eq.s32.totalorder %s17, 0
      %p80 = por %p78, %p79
      %p81 = scmp.ne.s32.totalorder %s69, %s70
      %p82 = scmp.eq.s32.totalorder %s18, 1
      %p83 = por %p81, %p82
      %p85 = scmp.ne.s32.totalorder %s70, %s84
      %p86 = scmp.eq.s32.totalorder %s18, 0
      %p87 = por %p85, %p86
      %s89 = sadd.s32 %s88, 1
      %p92 = scmp.eq.s32.totalorder %s12, 1
      %p93 = scmp.ne.s32.totalorder %s88, %s90
      %p94 = scmp.eq.s32.totalorder %s12, 0
      %p95 = por %p93, %p94
      %p96 = scmp.ne.s32.totalorder %s88, %s90
      %p97 = scmp.eq.s32.totalorder %s17, 1
      %p98 = por %p96, %p97
      %p99 = scmp.ne.s32.totalorder %s90, %s91
      %p100 = scmp.eq.s32.totalorder %s17, 0
      %p101 = por %p99, %p100
      %p102 = scmp.ne.s32.totalorder %s90, %s91
      %p103 = scmp.eq.s32.totalorder %s18, 1
      %p104 = por %p102, %p103
      %p106 = scmp.ne.s32.totalorder %s91, %s105
      %p107 = scmp.eq.s32.totalorder %s18, 0
      %p108 = por %p106, %p107
      %s110 = sadd.s32 %s109, 1
      %p113 = scmp.eq.s32.totalorder %s12, 1
      %p114 = scmp.ne.s32.totalorder %s109, %s111
      %p115 = scmp.eq.s32.totalorder %s12, 0
      %p116 = por %p114, %p115
      %p117 = scmp.ne.s32.totalorder %s109, %s111
      %p118 = scmp.eq.s32.totalorder %s17, 1
      %p119 = por %p117, %p118
      %p120 = scmp.ne.s32.totalorder %s111, %s112
      %p121 = scmp.eq.s32.totalorder %s17, 0
      %p122 = por %p120, %p121
      %p123 = scmp.ne.s32.totalorder %s111, %s112
      %p124 = scmp.eq.s32.totalorder %s18, 1
      %p125 = por %p123, %p124
      %p127 = scmp.ne.s32.totalorder %s112, %s126
      %p128 = scmp.eq.s32.totalorder %s18, 0
      %p129 = por %p127, %p128
      %s130 = ssub.s32 %s12, %s19
      %p131 = scmp.eq.s32.totalorder %s130, 0
      %s133 = sadd.s32 %s132, 1
      %s134 = scalar_select %p131, %s132, %s133
      %p137 = pneg %p131
      %p138 = scmp.eq.s32.totalorder %s12, 1
      %p139 = por %p137, %p138
      %p140 = scmp.ne.s32.totalorder %s132, %s135
      %p141 = scmp.eq.s32.totalorder %s12, 0
      %p142 = por %p140, %p141
      %p143 = scmp.ne.s32.totalorder %s132, %s135
      %p144 = scmp.eq.s32.totalorder %s17, 1
      %p145 = por %p143, %p144
      %p146 = scmp.ne.s32.totalorder %s135, %s136
      %p147 = scmp.eq.s32.totalorder %s17, 0
      %p148 = por %p146, %p147
      %p149 = scmp.ne.s32.totalorder %s135, %s136
      %p150 = scmp.eq.s32.totalorder %s18, 1
      %p151 = por %p149, %p150
      %p153 = scmp.ne.s32.totalorder %s136, %s152
      %p154 = scmp.eq.s32.totalorder %s18, 0
      %p155 = por %p153, %p154
      %p156 = scmp.le.s32.totalorder 1, %s12
      %p157 = scmp.lt.s32.totalorder %s12, 3
      %p158 = pnand %p156, %p157
      %p159 = pneg %p158
      // Predicated region
      $region9: #{tpu_custom_call.1} parent=5 // pred_check
        _
      $region10: #{tpu_custom_call.1} parent=5 // pred_check_branch
        %161 = sbr.rel (%p158) target = $region12
      $region11: #{tpu_custom_call.1} parent=5 // pred_region
        %s162 = ssub.s32 %s12, 1
        // Predicated region
        $region13: #{tpu_custom_call.1} parent=11 // pred_check
          %p163 = pneg %p59
        $region14: #{tpu_custom_call.1} parent=11 // pred_check_branch
          %165 = sbr.rel (%p163) target = $region16
        $region15: #{tpu_custom_call.1} parent=11 // pred_region
          %167 = vsyncadd [#allocation3], 0
          %s168 = sshll.u32 %s1, 4
          %s169 = int_to_ptr.hbm [resolvable:$true] %s168
          %s170 = sshll.u32 [#allocation2], 4
          %s171 = int_to_ptr.vmem [resolvable:$true] %s170
          %176 = dma.hbm_to_vmem [thread:$0]  %s169, 5120, %s171, [#allocation3], 256, 256, 16
        $region16: #{tpu_custom_call.1} parent=11 // pred_fallthru
          _
        // Predicated region
        $region17: #{tpu_custom_call.1} parent=11 // pred_check
          %p177 = pneg %p80
        $region18: #{tpu_custom_call.1} parent=11 // pred_check_branch
          %179 = sbr.rel (%p177) target = $region20
        $region19: #{tpu_custom_call.1} parent=11 // pred_region
          _
        $region20: #{tpu_custom_call.1} parent=11 // pred_fallthru
          _
        // Predicated region
        $region21: #{tpu_custom_call.1} parent=11 // pred_check
          %p180 = pneg %p101
        $region22: #{tpu_custom_call.1} parent=11 // pred_check_branch
          %182 = sbr.rel (%p180) target = $region24
        $region23: #{tpu_custom_call.1} parent=11 // pred_region
          _
        $region24: #{tpu_custom_call.1} parent=11 // pred_fallthru
          _
        // Predicated region
        $region25: #{tpu_custom_call.1} parent=11 // pred_check
          %p183 = pneg %p122
        $region26: #{tpu_custom_call.1} parent=11 // pred_check_branch
          %185 = sbr.rel (%p183) target = $region28
        $region27: #{tpu_custom_call.1} parent=11 // pred_region
          _
        $region28: #{tpu_custom_call.1} parent=11 // pred_fallthru
          _
      $region12: #{tpu_custom_call.1} parent=5 // pred_fallthru
        _
      %p186 = scmp.lt.s32.totalorder %s12, 2
      // Predicated region
      $region29: #{tpu_custom_call.1} parent=5 // pred_check
        %p187 = pneg %p186
      $region30: #{tpu_custom_call.1} parent=5 // pred_check_branch
        %189 = sbr.rel (%p187) target = $region32
      $region31: #{tpu_custom_call.1} parent=5 // pred_region
        // Predicated region
        $region33: #{tpu_custom_call.1} parent=31 // pred_check
          %p190 = pneg %p32
        $region34: #{tpu_custom_call.1} parent=31 // pred_check_branch
          %192 = sbr.rel (%p190) target = $region36
        $region35: #{tpu_custom_call.1} parent=31 // pred_region
          %p193 = scmp.lt.s32.totalorder %s12, 1
          %s194 = scalar_select %p193, %s12, 1
          %s195 = smul.addr %s194, 4
          %s196 = smul.addr %s195, 8
          %s197 = scalar_lea.vmem %s0, %s196
        $region36: #{tpu_custom_call.1} parent=31 // pred_fallthru
          _
      $region32: #{tpu_custom_call.1} parent=5 // pred_fallthru
        _
      %p198 = scmp.le.s32.totalorder 1, %s12
      %p199 = scmp.lt.s32.totalorder %s12, 3
      %p200 = pnand %p198, %p199
      %p201 = pneg %p200
      // Predicated region
      $region37: #{tpu_custom_call.1} parent=5 // pred_check
        _
      $region38: #{tpu_custom_call.1} parent=5 // pred_check_branch
        %203 = sbr.rel (%p200) target = $region40
      $region39: #{tpu_custom_call.1} parent=5 // pred_region
        %s204 = ssub.s32 %s12, 1
        // Predicated region
        $region41: #{tpu_custom_call.1} parent=39 // pred_check
          %p205 = pneg %p59
        $region42: #{tpu_custom_call.1} parent=39 // pred_check_branch
          %207 = sbr.rel (%p205) target = $region44
        $region43: #{tpu_custom_call.1} parent=39 // pred_region
          %209 = dma.done [#allocation3], 5120
        $region44: #{tpu_custom_call.1} parent=39 // pred_fallthru
          _
        %p210 = scmp.lt.s32.totalorder %s17, 1
        %s211 = scalar_select %p210, %s17, 1
        %s212 = smul.addr %s211, 4
        %s213 = smul.addr %s212, 8
        %s214 = scalar_lea.vmem %s0, %s213
        %p215 = pneg %p38
        %p216 = pneg %p35
        %p217 = pneg %p59
        %p218 = pneg %p56
        %p219 = pneg %p80
        %p220 = pneg %p77
        %p221 = pneg %p101
        %p222 = pneg %p98
        %p223 = pneg %p122
        %p224 = pneg %p119
        %p225 = pneg %p148
        %p226 = pneg %p145
        %p227 = scmp.lt.s32.totalorder %s17, 1
        %s228 = scalar_select %p227, %s17, 1
        %s229 = smul.addr %s228, 4
        %s230 = smul.addr %s229, 8
        %s231 = scalar_lea.vmem %s5, %s230
        %p232 = scmp.lt.s32.totalorder %s17, 1
        %s233 = scalar_select %p232, %s17, 1
        %s234 = smul.addr %s233, 4
        %s235 = smul.addr %s234, 8
        %s236 = scalar_lea.vmem %s0, %s235
        %p237 = scmp.lt.s32.totalorder %s17, 1
        %s238 = scalar_select %p237, %s17, 1
        %s239 = smul.addr %s238, 4
        %s240 = smul.addr %s239, 8
        %s241 = scalar_lea.vmem %s5, %s240
        %v242 = vld [vmem:[%s236] sm:$0xff]
        %v243 = vld [vmem:[%s236 + $0x8] sm:$0xff]
        %v244 = vld [vmem:[%s236 + $0x10] sm:$0x3]
        %v245 = vld [vmem:[%s236 + $0x18] sm:$0x3]
        %v246 = vld [vmem:[#allocation2] sm:$0xff]
        %v247 = vld [vmem:[#allocation2 + $0x8] sm:$0xff]
        %v248 = vld [vmem:[#allocation2 + $0x10] sm:$0xff]
        %v249 = vld [vmem:[#allocation2 + $0x18] sm:$0xff]
        %v250 = vld [vmem:[#allocation2 + $0x20] sm:$0xff]
        %v251 = vld [vmem:[#allocation2 + $0x28] sm:$0xff]
        %v252 = vld [vmem:[#allocation2 + $0x30] sm:$0xff]
        %v253 = vld [vmem:[#allocation2 + $0x38] sm:$0xff]
        %v254 = vld [vmem:[#allocation2 + $0x40] sm:$0xff]
        %v255 = vld [vmem:[#allocation2 + $0x48] sm:$0xff]
        %v256 = vld [vmem:[#allocation2 + $0x50] sm:$0xff]
        %v257 = vld [vmem:[#allocation2 + $0x58] sm:$0xff]
        %v258 = vld [vmem:[#allocation2 + $0x60] sm:$0xff]
        %v259 = vld [vmem:[#allocation2 + $0x68] sm:$0xff]
        %v260 = vld [vmem:[#allocation2 + $0x70] sm:$0xff]
        %v261 = vld [vmem:[#allocation2 + $0x78] sm:$0xff]
        %v262 = vld [vmem:[#allocation2 + $0x80] sm:$0xff]
        %v263 = vld [vmem:[#allocation2 + $0x88] sm:$0xff]
        %v264 = vld [vmem:[#allocation2 + $0x90] sm:$0xff]
        %v265 = vld [vmem:[#allocation2 + $0x98] sm:$0xff]
        %v266 = vld [vmem:[#allocation2 + $0xa0] sm:$0xff]
        %v267 = vld [vmem:[#allocation2 + $0xa8] sm:$0xff]
        %v268 = vld [vmem:[#allocation2 + $0xb0] sm:$0xff]
        %v269 = vld [vmem:[#allocation2 + $0xb8] sm:$0xff]
        %v270 = vld [vmem:[#allocation2 + $0xc0] sm:$0xff]
        %v271 = vld [vmem:[#allocation2 + $0xc8] sm:$0xff]
        %v272 = vld [vmem:[#allocation2 + $0xd0] sm:$0xff]
        %v273 = vld [vmem:[#allocation2 + $0xd8] sm:$0xff]
        %v274 = vld [vmem:[#allocation2 + $0xe0] sm:$0xff]
        %v275 = vld [vmem:[#allocation2 + $0xe8] sm:$0xff]
        %v276 = vld [vmem:[#allocation2 + $0xf0] sm:$0xff]
        %v277 = vld [vmem:[#allocation2 + $0xf8] sm:$0xff]
        %v278 = vld [vmem:[#allocation2 + $0x100] sm:$0xff]
        %v279 = vld [vmem:[#allocation2 + $0x108] sm:$0xff]
        %v280 = vld [vmem:[#allocation2 + $0x110] sm:$0xff]
        %v281 = vld [vmem:[#allocation2 + $0x118] sm:$0xff]
        %v282 = vld [vmem:[#allocation2 + $0x120] sm:$0xff]
        %v283 = vld [vmem:[#allocation2 + $0x128] sm:$0xff]
        %v284 = vld [vmem:[#allocation2 + $0x130] sm:$0xff]
        %v285 = vld [vmem:[#allocation2 + $0x138] sm:$0xff]
        %v286 = vld [vmem:[%s2] sm:$0x3]
        %v287 = vld [vmem:[%s3] sm:$0xff]
        %v288 = vld [vmem:[%s3 + $0x8] sm:$0x3]
        %v289 = vld [vmem:[%s4] sm:$0xff]
        %v290 = vld [vmem:[%s4 + $0x8] sm:$0x3]
        %v292 = vperm.slane %v286, 0
        %v293 = vperm.slane %v286, 1
        %vm296 = vcmask 261120
        %v298 = vsel %vm296, %v243, 0
        %v301 = vsel %vm296, %v245, 0
        %303 = vmatpush.msra.mxu0 %v276
        %304 = vmatpush.msra.mxu0 %v274
        %305 = vmatpush.msra.mxu0 %v272
        %306 = vmatpush.msra.mxu0 %v270
        %307 = vmatpush.msra.mxu0 %v268
        %308 = vmatpush.msra.mxu0 %v266
        %309 = vmatpush.msra.mxu0 %v264
        %310 = vmatpush.msra.mxu0 %v262
        %311 = vmatpush.msra.mxu0 %v260
        %312 = vmatpush.msra.mxu0 %v258
        %313 = vmatpush.msra.mxu0 %v256
        %314 = vmatpush.msra.mxu0 %v254
        %315 = vmatpush.msra.mxu0 %v252
        %316 = vmatpush.msra.mxu0 %v250
        %317 = vmatpush.msra.mxu0 %v248
        %318 = vmatpush.msra.mxu0 %v246
        %319 = vmatmul.f32.gmra.mxu0 %v242
        %v320 = vpop.f32.mrf.mxu0
        %v321 = vadd.f32 %v292, %v320
        %322 = vmatmul.f32.gmra.mxu0 %v244
        %v323 = vpop.f32.mrf.mxu0
        %v324 = vadd.f32 %v292, %v323
        %325 = vdwg.mxu0
        %326 = vmatpush.msra.mxu0 0.0
        %327 = vmatpush.msra.mxu0 0.0
        %328 = vmatpush.msra.mxu0 0.0
        %329 = vmatpush.msra.mxu0 0.0
        %330 = vmatpush.msra.mxu0 0.0
        %331 = vmatpush.msra.mxu0 0.0
        %332 = vmatpush.msra.mxu0 0.0
        %333 = vmatpush.msra.mxu0 0.0
        %334 = vmatpush.msra.mxu0 0.0
        %335 = vmatpush.msra.mxu0 0.0
        %336 = vmatpush.msra.mxu0 0.0
        %337 = vmatpush.msra.mxu0 0.0
        %338 = vmatpush.msra.mxu0 %v284
        %339 = vmatpush.msra.mxu0 %v282
        %340 = vmatpush.msra.mxu0 %v280
        %341 = vmatpush.msra.mxu0 %v278
        %342 = vmatmul.f32.gmra.mxu0 %v298
        %v343 = vpop.f32.mrf.mxu0
        %v344 = vadd.f32 %v321, %v343
        %345 = vmatmul.f32.gmra.mxu0 %v301
        %v346 = vpop.f32.mrf.mxu0
        %v347 = vadd.f32 %v324, %v346
        %348 = vdwg.mxu0
        %349 = vmatpush.msra.mxu0 %v277
        %350 = vmatpush.msra.mxu0 %v275
        %351 = vmatpush.msra.mxu0 %v273
        %352 = vmatpush.msra.mxu0 %v271
        %353 = vmatpush.msra.mxu0 %v269
        %354 = vmatpush.msra.mxu0 %v267
        %355 = vmatpush.msra.mxu0 %v265
        %356 = vmatpush.msra.mxu0 %v263
        %357 = vmatpush.msra.mxu0 %v261
        %358 = vmatpush.msra.mxu0 %v259
        %359 = vmatpush.msra.mxu0 %v257
        %360 = vmatpush.msra.mxu0 %v255
        %361 = vmatpush.msra.mxu0 %v253
        %362 = vmatpush.msra.mxu0 %v251
        %363 = vmatpush.msra.mxu0 %v249
        %364 = vmatpush.msra.mxu0 %v247
        %365 = vmatmul.f32.gmra.mxu0 %v242
        %v366 = vpop.f32.mrf.mxu0
        %v367 = vadd.f32 %v293, %v366
        %368 = vmatmul.f32.gmra.mxu0 %v244
        %v369 = vpop.f32.mrf.mxu0
        %v370 = vadd.f32 %v293, %v369
        %371 = vdwg.mxu0
        %372 = vmatpush.msra.mxu0 0.0
        %373 = vmatpush.msra.mxu0 0.0
        %374 = vmatpush.msra.mxu0 0.0
        %375 = vmatpush.msra.mxu0 0.0
        %376 = vmatpush.msra.mxu0 0.0
        %377 = vmatpush.msra.mxu0 0.0
        %378 = vmatpush.msra.mxu0 0.0
        %379 = vmatpush.msra.mxu0 0.0
        %380 = vmatpush.msra.mxu0 0.0
        %381 = vmatpush.msra.mxu0 0.0
        %382 = vmatpush.msra.mxu0 0.0
        %383 = vmatpush.msra.mxu0 0.0
        %384 = vmatpush.msra.mxu0 %v285
        %385 = vmatpush.msra.mxu0 %v283
        %386 = vmatpush.msra.mxu0 %v281
        %387 = vmatpush.msra.mxu0 %v279
        %388 = vmatmul.f32.gmra.mxu0 %v298
        %v389 = vpop.f32.mrf.mxu0
        %v390 = vadd.f32 %v367, %v389
        %391 = vmatmul.f32.gmra.mxu0 %v301
        %v392 = vpop.f32.mrf.mxu0
        %v393 = vadd.f32 %v370, %v392
        %394 = vdwg.mxu0
        %v395 = vsub.f32 0.0, %v344
        %v396 = vsub.f32 0.0, %v390
        %v397 = vsub.f32 0.0, %v347
        %v398 = vsub.f32 0.0, %v393
        %v399 = vmul.f32 %v395, 1.442695
        %v400 = vpow.pop %v399
        %v401 = vmul.f32 %v396, 1.442695
        %v402 = vpow.pop %v401
        %v403 = vmul.f32 %v397, 1.442695
        %v404 = vpow.pop %v403
        %v405 = vmul.f32 %v398, 1.442695
        %v406 = vpow.pop %v405
        %v407 = vadd.f32 %v400, 1.0
        %v408 = vadd.f32 %v402, 1.0
        %v409 = vadd.f32 %v404, 1.0
        %v410 = vadd.f32 %v406, 1.0
        %v411 = vrcp.pop %v407
        %v412 = vrcp.pop %v408
        %v413 = vrcp.pop %v409
        %v414 = vrcp.pop %v410
        %v415 = vmul.f32 %v344, %v411
        %v416 = vmul.f32 %v390, %v412
        %v417 = vmul.f32 %v347, %v413
        %v418 = vmul.f32 %v393, %v414
        %v419 = vmul.f32 %v415, 2.0
        %v420 = vmul.f32 %v416, 2.0
        %v421 = vmul.f32 %v417, 2.0
        %v422 = vmul.f32 %v418, 2.0
        %v423 = vsub.f32 %v419, 1.0
        %v424 = vsub.f32 %v420, 1.0
        %v425 = vsub.f32 %v421, 1.0
        %v426 = vsub.f32 %v422, 1.0
        %428 = vset.pattern.permute.xlu0 0
        %429 = vperm.xlu0 %428, %v289
        %v430 = vpop.permute.xlu0 %429
        %433 = vset.pattern.permute.xlu0 0
        %434 = vperm.xlu0 %433, %v290
        %v435 = vpop.permute.xlu0 %434
        %vm437 = vcmask 80896
        %v439 = vsel %vm437, %v287, 0
        %v442 = vsel %vm437, %v288, 0
        %vm444 = vcmask 1041408
        %v446 = vsel %vm444, %v425, 0
        %v449 = vsel %vm444, %v426, 0
        %451 = vmatpush.msra.mxu0 0.0
        %452 = vmatpush.msra.mxu0 0.0
        %453 = vmatpush.msra.mxu0 0.0
        %454 = vmatpush.msra.mxu0 0.0
        %455 = vmatpush.msra.mxu0 0.0
        %456 = vmatpush.msra.mxu0 0.0
        %457 = vmatpush.msra.mxu0 0.0
        %458 = vmatpush.msra.mxu0 0.0
        %459 = vmatpush.msra.mxu0 0.0
        %460 = vmatpush.msra.mxu0 0.0
        %461 = vmatpush.msra.mxu0 0.0
        %462 = vmatpush.msra.mxu0 0.0
        %463 = vmatpush.msra.mxu0 0.0
        %464 = vmatpush.msra.mxu0 0.0
        %465 = vmatpush.msra.mxu0 %v446
        %466 = vmatpush.msra.mxu0 %v423
        %467 = vmatmul.f32.gmra.mxu0 %v439
        %v468 = vpop.f32.mrf.mxu0
        %v469 = vadd.f32 %v430, %v468
        %470 = vmatmul.f32.gmra.mxu0 %v442
        %v471 = vpop.f32.mrf.mxu0
        %v472 = vadd.f32 %v435, %v471
        %473 = vdwg.mxu0
        %474 = vmatpush.msra.mxu0 0.0
        %475 = vmatpush.msra.mxu0 0.0
        %476 = vmatpush.msra.mxu0 0.0
        %477 = vmatpush.msra.mxu0 0.0
        %478 = vmatpush.msra.mxu0 0.0
        %479 = vmatpush.msra.mxu0 0.0
        %480 = vmatpush.msra.mxu0 0.0
        %481 = vmatpush.msra.mxu0 0.0
        %482 = vmatpush.msra.mxu0 0.0
        %483 = vmatpush.msra.mxu0 0.0
        %484 = vmatpush.msra.mxu0 0.0
        %485 = vmatpush.msra.mxu0 0.0
        %486 = vmatpush.msra.mxu0 0.0
        %487 = vmatpush.msra.mxu0 0.0
        %488 = vmatpush.msra.mxu0 %v449
        %489 = vmatpush.msra.mxu0 %v424
        %490 = vmatmul.f32.gmra.mxu0 %v439
        %v491 = vpop.f32.mrf.mxu0
        %v492 = vadd.f32 %v430, %v491
        %493 = vmatmul.f32.gmra.mxu0 %v442
        %v494 = vpop.f32.mrf.mxu0
        %v495 = vadd.f32 %v435, %v494
        %496 = vdwg.mxu0
        %v497 = vtanh.pop %v469
        %v498 = vtanh.pop %v492
        %v499 = vtanh.pop %v472
        %v500 = vtanh.pop %v495
        %v502 = vsel %vm444, %v499, 0
        %v505 = vsel %vm444, %v500, 0
        %507 = vmatpush.msra.mxu0 0.0
        %508 = vmatpush.msra.mxu0 0.0
        %509 = vmatpush.msra.mxu0 0.0
        %510 = vmatpush.msra.mxu0 0.0
        %511 = vmatpush.msra.mxu0 0.0
        %512 = vmatpush.msra.mxu0 0.0
        %513 = vmatpush.msra.mxu0 0.0
        %514 = vmatpush.msra.mxu0 0.0
        %515 = vmatpush.msra.mxu0 0.0
        %516 = vmatpush.msra.mxu0 0.0
        %517 = vmatpush.msra.mxu0 0.0
        %518 = vmatpush.msra.mxu0 0.0
        %519 = vmatpush.msra.mxu0 0.0
        %520 = vmatpush.msra.mxu0 0.0
        %521 = vmatpush.msra.mxu0 %v502
        %522 = vmatpush.msra.mxu0 %v497
        %523 = vmatmul.f32.gmra.mxu0 %v439
        %v524 = vpop.f32.mrf.mxu0
        %v525 = vadd.f32 %v430, %v524
        %526 = vmatmul.f32.gmra.mxu0 %v442
        %v527 = vpop.f32.mrf.mxu0
        %v528 = vadd.f32 %v435, %v527
        %529 = vdwg.mxu0
        %530 = vmatpush.msra.mxu0 0.0
        %531 = vmatpush.msra.mxu0 0.0
        %532 = vmatpush.msra.mxu0 0.0
        %533 = vmatpush.msra.mxu0 0.0
        %534 = vmatpush.msra.mxu0 0.0
        %535 = vmatpush.msra.mxu0 0.0
        %536 = vmatpush.msra.mxu0 0.0
        %537 = vmatpush.msra.mxu0 0.0
        %538 = vmatpush.msra.mxu0 0.0
        %539 = vmatpush.msra.mxu0 0.0
        %540 = vmatpush.msra.mxu0 0.0
        %541 = vmatpush.msra.mxu0 0.0
        %542 = vmatpush.msra.mxu0 0.0
        %543 = vmatpush.msra.mxu0 0.0
        %544 = vmatpush.msra.mxu0 %v505
        %545 = vmatpush.msra.mxu0 %v498
        %546 = vmatmul.f32.gmra.mxu0 %v439
        %v547 = vpop.f32.mrf.mxu0
        %v548 = vadd.f32 %v430, %v547
        %549 = vmatmul.f32.gmra.mxu0 %v442
        %v550 = vpop.f32.mrf.mxu0
        %v551 = vadd.f32 %v435, %v550
        %552 = vdwg.mxu0
        %v553 = vsub.f32 0.0, %v525
        %v554 = vsub.f32 0.0, %v548
        %v555 = vsub.f32 0.0, %v528
        %v556 = vsub.f32 0.0, %v551
        %v557 = vmul.f32 %v553, 1.442695
        %v558 = vpow.pop %v557
        %v559 = vmul.f32 %v554, 1.442695
        %v560 = vpow.pop %v559
        %v561 = vmul.f32 %v555, 1.442695
        %v562 = vpow.pop %v561
        %v563 = vmul.f32 %v556, 1.442695
        %v564 = vpow.pop %v563
        %v565 = vadd.f32 %v558, 1.0
        %v566 = vadd.f32 %v560, 1.0
        %v567 = vadd.f32 %v562, 1.0
        %v568 = vadd.f32 %v564, 1.0
        %v569 = vrcp.pop %v565
        %v570 = vrcp.pop %v566
        %v571 = vrcp.pop %v567
        %v572 = vrcp.pop %v568
        %v573 = vmul.f32 %v525, %v569
        %v574 = vmul.f32 %v548, %v570
        %v575 = vmul.f32 %v528, %v571
        %v576 = vmul.f32 %v551, %v572
        %v577 = vmul.f32 %v573, 2.0
        %v578 = vmul.f32 %v574, 2.0
        %v579 = vmul.f32 %v575, 2.0
        %v580 = vmul.f32 %v576, 2.0
        %v581 = vsub.f32 %v577, 1.0
        %v582 = vsub.f32 %v578, 1.0
        %v583 = vsub.f32 %v579, 1.0
        %v584 = vsub.f32 %v580, 1.0
        %v586 = vsel %vm296, %v582, 0
        %v589 = vsel %vm296, %v584, 0
        %591 = vmatpush.msra.mxu0 %v276
        %592 = vmatpush.msra.mxu0 %v274
        %593 = vmatpush.msra.mxu0 %v272
        %594 = vmatpush.msra.mxu0 %v270
        %595 = vmatpush.msra.mxu0 %v268
        %596 = vmatpush.msra.mxu0 %v266
        %597 = vmatpush.msra.mxu0 %v264
        %598 = vmatpush.msra.mxu0 %v262
        %599 = vmatpush.msra.mxu0 %v260
        %600 = vmatpush.msra.mxu0 %v258
        %601 = vmatpush.msra.mxu0 %v256
        %602 = vmatpush.msra.mxu0 %v254
        %603 = vmatpush.msra.mxu0 %v252
        %604 = vmatpush.msra.mxu0 %v250
        %605 = vmatpush.msra.mxu0 %v248
        %606 = vmatpush.msra.mxu0 %v246
        %607 = vmatmul.f32.gmra.mxu0 %v581
        %v608 = vpop.f32.mrf.mxu0
        %v609 = vadd.f32 %v292, %v608
        %610 = vmatmul.f32.gmra.mxu0 %v583
        %v611 = vpop.f32.mrf.mxu0
        %v612 = vadd.f32 %v292, %v611
        %613 = vdwg.mxu0
        %614 = vmatpush.msra.mxu0 0.0
        %615 = vmatpush.msra.mxu0 0.0
        %616 = vmatpush.msra.mxu0 0.0
        %617 = vmatpush.msra.mxu0 0.0
        %618 = vmatpush.msra.mxu0 0.0
        %619 = vmatpush.msra.mxu0 0.0
        %620 = vmatpush.msra.mxu0 0.0
        %621 = vmatpush.msra.mxu0 0.0
        %622 = vmatpush.msra.mxu0 0.0
        %623 = vmatpush.msra.mxu0 0.0
        %624 = vmatpush.msra.mxu0 0.0
        %625 = vmatpush.msra.mxu0 0.0
        %626 = vmatpush.msra.mxu0 %v284
        %627 = vmatpush.msra.mxu0 %v282
        %628 = vmatpush.msra.mxu0 %v280
        %629 = vmatpush.msra.mxu0 %v278
        %630 = vmatmul.f32.gmra.mxu0 %v586
        %v631 = vpop.f32.mrf.mxu0
        %v632 = vadd.f32 %v609, %v631
        %633 = vmatmul.f32.gmra.mxu0 %v589
        %v634 = vpop.f32.mrf.mxu0
        %v635 = vadd.f32 %v612, %v634
        %636 = vdwg.mxu0
        %637 = vmatpush.msra.mxu0 %v277
        %638 = vmatpush.msra.mxu0 %v275
        %639 = vmatpush.msra.mxu0 %v273
        %640 = vmatpush.msra.mxu0 %v271
        %641 = vmatpush.msra.mxu0 %v269
        %642 = vmatpush.msra.mxu0 %v267
        %643 = vmatpush.msra.mxu0 %v265
        %644 = vmatpush.msra.mxu0 %v263
        %645 = vmatpush.msra.mxu0 %v261
        %646 = vmatpush.msra.mxu0 %v259
        %647 = vmatpush.msra.mxu0 %v257
        %648 = vmatpush.msra.mxu0 %v255
        %649 = vmatpush.msra.mxu0 %v253
        %650 = vmatpush.msra.mxu0 %v251
        %651 = vmatpush.msra.mxu0 %v249
        %652 = vmatpush.msra.mxu0 %v247
        %653 = vmatmul.f32.gmra.mxu0 %v581
        %v654 = vpop.f32.mrf.mxu0
        %v655 = vadd.f32 %v293, %v654
        %656 = vmatmul.f32.gmra.mxu0 %v583
        %v657 = vpop.f32.mrf.mxu0
        %v658 = vadd.f32 %v293, %v657
        %659 = vdwg.mxu0
        %660 = vmatpush.msra.mxu0 0.0
        %661 = vmatpush.msra.mxu0 0.0
        %662 = vmatpush.msra.mxu0 0.0
        %663 = vmatpush.msra.mxu0 0.0
        %664 = vmatpush.msra.mxu0 0.0
        %665 = vmatpush.msra.mxu0 0.0
        %666 = vmatpush.msra.mxu0 0.0
        %667 = vmatpush.msra.mxu0 0.0
        %668 = vmatpush.msra.mxu0 0.0
        %669 = vmatpush.msra.mxu0 0.0
        %670 = vmatpush.msra.mxu0 0.0
        %671 = vmatpush.msra.mxu0 0.0
        %672 = vmatpush.msra.mxu0 %v285
        %673 = vmatpush.msra.mxu0 %v283
        %674 = vmatpush.msra.mxu0 %v281
        %675 = vmatpush.msra.mxu0 %v279
        %676 = vmatmul.f32.gmra.mxu0 %v586
        %v677 = vpop.f32.mrf.mxu0
        %v678 = vadd.f32 %v655, %v677
        %679 = vmatmul.f32.gmra.mxu0 %v589
        %v680 = vpop.f32.mrf.mxu0
        %v681 = vadd.f32 %v658, %v680
        %682 = vdwg.mxu0
        %v683 = vtanh.pop %v632
        %v684 = vtanh.pop %v678
        %v685 = vtanh.pop %v635
        %v686 = vtanh.pop %v681
        %687 = vst [vmem:[%s241] sm:$0xff] %v683
        %688 = vst.msk [vmem:[%s241 + $0x8] sm:$0xff] %vm296, %v684
        %689 = vst [vmem:[%s241 + $0x10] sm:$0x3] %v685
        %vm690 = vcmask 254976
        %691 = vst.msk [vmem:[%s241 + $0x18] sm:$0x3] %vm690, %v686
        %p692 = scmp.lt.s32.totalorder %s17, 1
        %s693 = scalar_select %p692, %s17, 1
        %s694 = smul.addr %s693, 4
        %s695 = smul.addr %s694, 8
        %s696 = scalar_lea.vmem %s5, %s695
        // Predicated region
        $region45: #{tpu_custom_call.1} parent=39 // pred_check
          %p697 = pneg %p145
        $region46: #{tpu_custom_call.1} parent=39 // pred_check_branch
          %699 = sbr.rel (%p697) target = $region48
        $region47: #{tpu_custom_call.1} parent=39 // pred_region
          _
        $region48: #{tpu_custom_call.1} parent=39 // pred_fallthru
          _
      $region40: #{tpu_custom_call.1} parent=5 // pred_fallthru
        _
      %p700 = scmp.le.s32.totalorder 2, %s12
      // Predicated region
      $region49: #{tpu_custom_call.1} parent=5 // pred_check
        %p701 = pneg %p700
      $region50: #{tpu_custom_call.1} parent=5 // pred_check_branch
        %703 = sbr.rel (%p701) target = $region52
      $region51: #{tpu_custom_call.1} parent=5 // pred_region
        %s704 = ssub.s32 %s12, 2
        // Predicated region
        $region53: #{tpu_custom_call.1} parent=51 // pred_check
          %p705 = pneg %p151
        $region54: #{tpu_custom_call.1} parent=51 // pred_check_branch
          %707 = sbr.rel (%p705) target = $region56
        $region55: #{tpu_custom_call.1} parent=51 // pred_region
          %p708 = scmp.lt.s32.totalorder %s18, 1
          %s709 = scalar_select %p708, %s18, 1
          %s710 = smul.addr %s709, 4
          %s711 = smul.addr %s710, 8
          %s712 = scalar_lea.vmem %s5, %s711
        $region56: #{tpu_custom_call.1} parent=51 // pred_fallthru
          _
      $region52: #{tpu_custom_call.1} parent=5 // pred_fallthru
        _
    $region6: #{tpu_custom_call.1} parent=1 // loop_footer
      %s16 = sadd.s32 1, %s12
    $region7: #{tpu_custom_call.1} parent=1 // loop_footer_branch
      %11 = sbr.rel target = $region3
    $region8: #{tpu_custom_call.1} parent=1 // loop_exit
      _
    %713 = vsyncpa [#allocation3], 1
    %s714 = scalar_lea.sflag [#allocation3], 1
    %715 = vsyncpa %s714, 1

</llo_original>
